<compile_context>
chip_gen: v6e
topology: v6e:2x2x1
jax: 0.10.0
libtpu: 0.0.40
codegen_flags: <defaults>
</compile_context>

<pallas_src>
import functools

import jax
import jax.numpy as jnp
from jax.experimental import pallas as pl
from jax.experimental.pallas import tpu as pltpu


def _gemm_bias_prelu_kernel(p_ref, w_ref, b_ref, alpha_ref, o_ref):
    # p_ref:     (TM, K)   bf16  im2col patch tile
    # w_ref:     (K, TN)   bf16  weight slab for this Cout half
    # b_ref:     (1, TN)   f32
    # alpha_ref: (1,)      f32   (SMEM scalar)
    # o_ref:     (TM, TN)  f32
    acc = jnp.dot(p_ref[...], w_ref[...], preferred_element_type=jnp.float32)
    acc = acc + b_ref[...]                       # (1, TN) broadcasts over TM
    alpha = alpha_ref[0]
    o_ref[...] = jnp.where(acc >= 0, acc, alpha * acc).astype(o_ref.dtype)


def prepare_params(weight_oihw, bias, alpha):
    """One-time (init-time) parameter layout prep — hoisted out of the hot path."""
    Cout, Cin, KH, KW = weight_oihw.shape
    w_hwio = jnp.transpose(weight_oihw, (2, 3, 1, 0))              # (KH, KW, Cin, Cout)
    w2 = w_hwio.reshape(KH * KW * Cin, Cout).astype(jnp.bfloat16)  # (K, Cout)
    b2 = bias.reshape(1, Cout).astype(jnp.float32)
    a1 = jnp.asarray(alpha, jnp.float32).reshape(1)
    return w2, b2, a1, (KH, KW)


def _im2col(x_nhwc, KH, KW):
    """(N, H, W, Cin) -> (N*Ho*Wo, KH*KW*Cin), tap order (kh, kw, cin)."""
    N, H, W, Cin = x_nhwc.shape
    Ho, Wo = H - KH + 1, W - KW + 1
    patches = [x_nhwc[:, kh:kh + Ho, kw:kw + Wo, :]
               for kh in range(KH) for kw in range(KW)]
    p = jnp.concatenate(patches, axis=-1)                          # (N, Ho, Wo, K)
    return p.reshape(N * Ho * Wo, KH * KW * Cin)


def upsample_block(x_nchw, w2, b2, a1, *, KH, KW, upscale_factor=4):
    """Conv(k=3,s=1,p=0)+bias+PReLU as one tiled Pallas GEMM, then PixelShuffle glue.

    x_nchw: (N, Cin, H, W) f32     w2: (KH*KW*Cin, Cout) bf16
    b2:     (1, Cout) f32          a1: (1,) f32 (PReLU single parameter)
    returns (N, Cout // r^2, (H-KH+1)*r, (W-KW+1)*r) f32 in NCHW.
    """
    N, Cin, H, W = x_nchw.shape
    K, Cout = w2.shape
    Ho, Wo = H - KH + 1, W - KW + 1
    r = upscale_factor
    M = N * Ho * Wo

    # NHWC + bf16 once, then im2col (XLA-side; cheap rectangular slices/concat).
    x_nhwc = jnp.transpose(x_nchw, (0, 2, 3, 1)).astype(jnp.bfloat16)
    patches = _im2col(x_nhwc, KH, KW)                              # (M, K) bf16

    # M tiling: sublane-aligned tiles of at most 512 rows; pad the tail tile.
    m_pad8 = -(-M // 8) * 8
    TM = min(m_pad8, 512)
    grid_m = -(-m_pad8 // TM)
    M_tot = grid_m * TM
    if M_tot != M:
        patches = jnp.pad(patches, ((0, M_tot - M), (0, 0)))

    # Lane-dense 128-wide Cout halves -> inner grid axis (weight slab per step).
    TN = 128 if Cout % 128 == 0 else Cout
    nj = Cout // TN

    cost = pl.CostEstimate(
        flops=2 * M_tot * K * Cout,
        transcendentals=0,
        bytes_accessed=(M_tot * K * 2 + K * Cout * 2
                        + Cout * 4 + M_tot * Cout * 4),
    )

    y = pl.pallas_call(
        _gemm_bias_prelu_kernel,
        out_shape=jax.ShapeDtypeStruct((M_tot, Cout), jnp.float32),
        grid=(grid_m, nj),
        in_specs=[
            pl.BlockSpec((TM, K), lambda i, j: (i, 0)),            # patch tile (resident over j)
            pl.BlockSpec((K, TN), lambda i, j: (0, j)),            # Cout half of weights
            pl.BlockSpec((1, TN), lambda i, j: (0, j)),            # Cout half of bias
            pl.BlockSpec(memory_space=pltpu.MemorySpace.SMEM),     # alpha scalar
        ],
        out_specs=pl.BlockSpec((TM, TN), lambda i, j: (i, j)),
        compiler_params=pltpu.CompilerParams(
            dimension_semantics=("parallel", "parallel")),
        cost_estimate=cost,
    )(patches, w2, b2, a1)

    if M_tot != M:
        y = y[:M]

    # PixelShuffle (PyTorch semantics: channel = c*r^2 + i*r + j) straight from the
    # NHWC-flattened GEMM output to NCHW: one 6-D transpose, no extra NCHW hop.
    C = Cout // (r * r)
    y = y.reshape(N, Ho, Wo, C, r, r)
    y = jnp.transpose(y, (0, 3, 1, 4, 2, 5))                       # (N, C, Ho, r, Wo, r)
    return y.reshape(N, C, Ho * r, Wo * r)


def _reference(x_nchw, weight_oihw, bias, alpha, *, upscale_factor=4):
    """Pure-JAX reference reproducing the PyTorch module (same bf16 operand cast
    as the kernel so the comparison is apples-to-apples; accumulation in f32)."""
    y = jax.lax.conv_general_dilated(
        x_nchw.astype(jnp.bfloat16), weight_oihw.astype(jnp.bfloat16),
        window_strides=(1, 1), padding="VALID",
        dimension_numbers=("NCHW", "OIHW", "NCHW"),
        preferred_element_type=jnp.float32)
    y = y + bias[None, :, None, None]
    y = jnp.where(y >= 0, y, alpha * y)
    N, Cout, Ho, Wo = y.shape
    r = upscale_factor
    C = Cout // (r * r)
    y = y.reshape(N, C, r, r, Ho, Wo)
    y = jnp.transpose(y, (0, 1, 4, 2, 5, 3))
    return y.reshape(N, C, Ho * r, Wo * r)


if __name__ == "__main__":
    # Module defaults: in_channels=64, out_channels=256, kernel=3, pad=0, r=4.
    N, Cin, H, W = 2, 64, 10, 10
    Cout, KH, KW, R = 256, 3, 3, 4

    key = jax.random.PRNGKey(0)
    kx, kw, kb = jax.random.split(key, 3)
    x = jax.random.normal(kx, (N, Cin, H, W), dtype=jnp.float32)
    weight = jax.random.normal(kw, (Cout, Cin, KH, KW), dtype=jnp.float32) * 0.05
    bias = jax.random.normal(kb, (Cout,), dtype=jnp.float32) * 0.1
    alpha = jnp.float32(0.25)  # PReLU default init

    # One-time parameter prep (hoisted out of the per-call path).
    w2, b2, a1, (kh, kw_) = prepare_params(weight, bias, alpha)

    fwd = jax.jit(functools.partial(upsample_block, KH=kh, KW=kw_, upscale_factor=R))
    out = jax.block_until_ready(fwd(x, w2, b2, a1))

    ref = jax.block_until_ready(_reference(x, weight, bias, alpha, upscale_factor=R))

    Ho, Wo = H - KH + 1, W - KW + 1
    assert out.shape == (N, Cout // (R * R), Ho * R, Wo * R), out.shape
    err = float(jnp.max(jnp.abs(out - ref)))
    assert jnp.allclose(out, ref, atol=1e-2, rtol=1e-2), err
    print("KERNEL_OK")
</pallas_src>

<mosaic_0001>
module attributes {stable_mosaic.version = 11 : i64} {
  func.func @_gemm_bias_prelu_kernel(%arg0: i32, %arg1: i32, %arg2: memref<128x576xbf16, #tpu.memory_space<vmem>>, %arg3: memref<576x128xbf16, #tpu.memory_space<vmem>>, %arg4: memref<1x128xf32, #tpu.memory_space<vmem>>, %arg5: memref<1xf32, #tpu.memory_space<smem>>, %arg6: memref<128x128xf32, #tpu.memory_space<vmem>>) attributes {dimension_semantics = [#tpu.dimension_semantics<parallel>, #tpu.dimension_semantics<parallel>], iteration_bounds = array<i64: 1, 2>, scalar_prefetch = 0 : i64, scratch_operands = 0 : i64, tpu.core_type = #tpu.core_type<tc>, window_params = [{transform_indices = @transform_0, window_bounds = array<i64: 128, 576>}, {transform_indices = @transform_1, window_bounds = array<i64: 576, 128>}, {transform_indices = @transform_2, window_bounds = array<i64: 1, 128>}, {transform_indices = @transform_3, window_bounds = array<i64: 1>}, {transform_indices = @transform_4, window_bounds = array<i64: 128, 128>}]} {
    %c0 = arith.constant 0 : index
    %c0_0 = arith.constant 0 : index
    %0 = vector.load %arg2[%c0, %c0_0] : memref<128x576xbf16, #tpu.memory_space<vmem>>, vector<128x576xbf16>
    %c0_1 = arith.constant 0 : index
    %c0_2 = arith.constant 0 : index
    %1 = vector.load %arg3[%c0_1, %c0_2] : memref<576x128xbf16, #tpu.memory_space<vmem>>, vector<576x128xbf16>
    %cst = arith.constant dense<0.000000e+00> : vector<128x128xf32>
    %2 = tpu.matmul %0, %1, %cst {dimension_numbers = #tpu.dot_dimension_numbers<[1], [0], [0], [1], [0, 0, 1, 1], [], []>} : vector<128x576xbf16>, vector<576x128xbf16>, vector<128x128xf32> -> vector<128x128xf32>
    %c0_3 = arith.constant 0 : index
    %c0_4 = arith.constant 0 : index
    %3 = vector.load %arg4[%c0_3, %c0_4] : memref<1x128xf32, #tpu.memory_space<vmem>>, vector<1x128xf32>
    %4 = vector.broadcast %3 : vector<1x128xf32> to vector<128x128xf32>
    %5 = arith.addf %2, %4 : vector<128x128xf32>
    %c0_5 = arith.constant 0 : index
    %6 = memref.load %arg5[%c0_5] : memref<1xf32, #tpu.memory_space<smem>>
    %cst_6 = arith.constant 0.000000e+00 : f32
    %7 = vector.broadcast %cst_6 : f32 to vector<128x128xf32>
    %8 = arith.cmpf oge, %5, %7 : vector<128x128xf32>
    %9 = vector.broadcast %6 : f32 to vector<128x128xf32>
    %10 = arith.mulf %9, %5 : vector<128x128xf32>
    %11 = arith.select %8, %5, %10 : vector<128x128xi1>, vector<128x128xf32>
    %c0_7 = arith.constant 0 : index
    %c0_8 = arith.constant 0 : index
    %12 = vector.load %arg6[%c0_7, %c0_8] : memref<128x128xf32, #tpu.memory_space<vmem>>, vector<128x128xf32>
    tpu.vector_store %arg6[%c0_7, %c0_8], %11 {strides = array<i32>} : memref<128x128xf32, #tpu.memory_space<vmem>>, vector<128x128xf32>,
    return
  }
  func.func @transform_0(%arg0: i32, %arg1: i32) -> (i32, i32) {
    %c0_i32 = arith.constant 0 : i32
    %c0_i32_0 = arith.constant 0 : i32
    return %arg0, %c0_i32 : i32, i32
  }
  func.func @transform_1(%arg0: i32, %arg1: i32) -> (i32, i32) {
    %c0_i32 = arith.constant 0 : i32
    %c0_i32_0 = arith.constant 0 : i32
    return %c0_i32, %arg1 : i32, i32
  }
  func.func @transform_2(%arg0: i32, %arg1: i32) -> (i32, i32) {
    %c0_i32 = arith.constant 0 : i32
    %c0_i32_0 = arith.constant 0 : i32
    return %c0_i32, %arg1 : i32, i32
  }
  func.func @transform_3(%arg0: i32, %arg1: i32) -> i32 {
    %c0_i32 = arith.constant 0 : i32
    %c0_i32_0 = arith.constant 0 : i32
    return %c0_i32 : i32
  }
  func.func @transform_4(%arg0: i32, %arg1: i32) -> (i32, i32) {
    %c0_i32 = arith.constant 0 : i32
    return %arg0, %arg1 : i32, i32
  }
}

</mosaic_0001>

<llo_original>
// kernel: upsample_block.1
$region0: #{upsample_block.1}
  #allocation0 [shape = 'u32[]', space=smem, size = 0x4, offset = 0x4, fixed_abs, tag = 'smem constant byte address 0x4 - core index']
  #allocation1 [shape = 'u32[144,128]{1,0:T(1,128)}', space=vmem, size = 0x12000, scoped, tag = 'internal scratch']
  #allocation2 [shape = 'f32[1]{0:T(128)S(6)}', space=smem, size = 0x200, scoped, tag = 'scoped memory for upsample_block.1']
  %s0 = inlined_call_operand.vmem [shape: bf16[128,576], index: 0, kind: input, shape index: {}]
  %s1 = inlined_call_operand.hbm [shape: bf16[576,256], index: 1, kind: input, shape index: {}]
  %s2 = inlined_call_operand.hbm [shape: f32[1,256], index: 2, kind: input, shape index: {}]
  %s3 = inlined_call_operand.<no memory space> [shape: f32[1], index: 3, kind: input, shape index: {}]
  %s4 = inlined_call_operand.vmem [shape: f32[128,256], index: 4, kind: output, shape index: {}]
  %s5 = sld [smem:[#allocation0]]
  $region91: #{upsample_block.1} parent=0
    _
  %s7 = ssub.s32 1, %s5
  %s8 = scalar_select 0, %s7, %s5
  %9 = sst [smem:[#allocation2]] %s3
  $region1: #{upsample_block.1} parent=0
    #allocation3 [shape = 'u8[294912]{0}', space=vmem, size = 0x48000, scoped, tag = 'input window, operand 1']
    #allocation4 [shape = 's32[2]{0}', space=sflag, size = 0x8, scoped, tag = 'scoped memory for upsample_block.1']
    #allocation5 [shape = 'u8[1024]{0}', space=vmem, size = 0x400, scoped, tag = 'input window, operand 2']
    #allocation6 [shape = 's32[2]{0}', space=sflag, size = 0x8, scoped, tag = 'scoped memory for upsample_block.1']
    #allocation7 [shape = 'u8[131072]{0}', space=vmem, size = 0x20000, scoped, tag = 'output window, operand 0']
    %10 = vsyncpa [#allocation4], 0
    %s11 = scalar_lea.sflag [#allocation4], 1
    %12 = vsyncpa %s11, 0
    %13 = vsyncpa [#allocation6], 0
    %s14 = scalar_lea.sflag [#allocation6], 1
    %15 = vsyncpa %s14, 0
    loop: start=0, step=1, limit=4
    $region2: #{upsample_block.1} parent=1 // loop_pre_header
      _
    $region3: #{upsample_block.1} parent=1 // loop_header
      %s17 = sphi 0, %s21
      %p18 = scmp.ge.s32.totalorder %s17, 4
      %s24 = sphi 0, %s36
      %s25 = sphi 0, %s32
      %s26 = sphi 0, %s24
      %s27 = sphi 0, %s25
      %s28 = sphi 0, %s26
      %s29 = sphi 0, %s27
      %s39 = sphi 0, %s41
      %s42 = sphi 0, %s39
      %s43 = sphi 0, %s42
      %s59 = sphi 0, %s43
      %s65 = sphi 0, %s67
      %s68 = sphi 0, %s65
      %s69 = sphi 0, %s68
      %s85 = sphi 0, %s69
      %s91 = sphi 0, %s93
      %s94 = sphi 0, %s91
      %s95 = sphi 0, %s94
      %s111 = sphi 0, %s95
      %s115 = sphi 0, %s115
      %s117 = sphi 0, %s115
      %s118 = sphi 0, %s117
      %s132 = sphi 0, %s118
      %s140 = sphi 0, %s142
      %s143 = sphi 0, %s140
      %s144 = sphi 0, %s143
      %s160 = sphi 0, %s144
    $region4: #{upsample_block.1} parent=1 // loop_header_branch
      %20 = sbr.rel (%p18) target = $region8
    $region5: #{upsample_block.1} parent=1 // loop_body
      %s22 = ssub.s32 %s17, 1
      %s23 = ssub.s32 %s17, 2
      %s30 = sadd.s32 1, %s25
      %p31 = scmp.ge.s32.totalorder %s30, 2
      %s32 = scalar_select %p31, 0, %s30
      %s33 = sadd.s32 1, %s24
      %s34 = scalar_select %p31, %s33, %s24
      %p35 = scmp.ge.s32.totalorder %s34, 1
      %s36 = scalar_select %p35, 0, %s34
      %s37 = ssub.s32 %s24, %s36
      %p38 = scmp.eq.s32.totalorder %s37, 0
      %s40 = sadd.s32 %s39, 1
      %s41 = scalar_select %p38, %s39, %s40
      %p44 = pneg %p38
      %p45 = scmp.eq.s32.totalorder %s17, 1
      %p46 = por %p44, %p45
      %p47 = scmp.ne.s32.totalorder %s39, %s42
      %p48 = scmp.eq.s32.totalorder %s17, 0
      %p49 = por %p47, %p48
      %p50 = scmp.ne.s32.totalorder %s39, %s42
      %p51 = scmp.eq.s32.totalorder %s22, 1
      %p52 = por %p50, %p51
      %p53 = scmp.ne.s32.totalorder %s42, %s43
      %p54 = scmp.eq.s32.totalorder %s22, 0
      %p55 = por %p53, %p54
      %p56 = scmp.ne.s32.totalorder %s42, %s43
      %p57 = scmp.eq.s32.totalorder %s23, 1
      %p58 = por %p56, %p57
      %p60 = scmp.ne.s32.totalorder %s43, %s59
      %p61 = scmp.eq.s32.totalorder %s23, 0
      %p62 = por %p60, %p61
      %s63 = ssub.s32 %s25, %s32
      %p64 = scmp.eq.s32.totalorder %s63, 0
      %s66 = sadd.s32 %s65, 1
      %s67 = scalar_select %p64, %s65, %s66
      %p70 = pneg %p64
      %p71 = scmp.eq.s32.totalorder %s17, 1
      %p72 = por %p70, %p71
      %p73 = scmp.ne.s32.totalorder %s65, %s68
      %p74 = scmp.eq.s32.totalorder %s17, 0
      %p75 = por %p73, %p74
      %p76 = scmp.ne.s32.totalorder %s65, %s68
      %p77 = scmp.eq.s32.totalorder %s22, 1
      %p78 = por %p76, %p77
      %p79 = scmp.ne.s32.totalorder %s68, %s69
      %p80 = scmp.eq.s32.totalorder %s22, 0
      %p81 = por %p79, %p80
      %p82 = scmp.ne.s32.totalorder %s68, %s69
      %p83 = scmp.eq.s32.totalorder %s23, 1
      %p84 = por %p82, %p83
      %p86 = scmp.ne.s32.totalorder %s69, %s85
      %p87 = scmp.eq.s32.totalorder %s23, 0
      %p88 = por %p86, %p87
      %s89 = ssub.s32 %s25, %s32
      %p90 = scmp.eq.s32.totalorder %s89, 0
      %s92 = sadd.s32 %s91, 1
      %s93 = scalar_select %p90, %s91, %s92
      %p96 = pneg %p90
      %p97 = scmp.eq.s32.totalorder %s17, 1
      %p98 = por %p96, %p97
      %p99 = scmp.ne.s32.totalorder %s91, %s94
      %p100 = scmp.eq.s32.totalorder %s17, 0
      %p101 = por %p99, %p100
      %p102 = scmp.ne.s32.totalorder %s91, %s94
      %p103 = scmp.eq.s32.totalorder %s22, 1
      %p104 = por %p102, %p103
      %p105 = scmp.ne.s32.totalorder %s94, %s95
      %p106 = scmp.eq.s32.totalorder %s22, 0
      %p107 = por %p105, %p106
      %p108 = scmp.ne.s32.totalorder %s94, %s95
      %p109 = scmp.eq.s32.totalorder %s23, 1
      %p110 = por %p108, %p109
      %p112 = scmp.ne.s32.totalorder %s95, %s111
      %p113 = scmp.eq.s32.totalorder %s23, 0
      %p114 = por %p112, %p113
      %s116 = sadd.s32 %s115, 1
      %p119 = scmp.eq.s32.totalorder %s17, 1
      %p120 = scmp.ne.s32.totalorder %s115, %s117
      %p121 = scmp.eq.s32.totalorder %s17, 0
      %p122 = por %p120, %p121
      %p123 = scmp.ne.s32.totalorder %s115, %s117
      %p124 = scmp.eq.s32.totalorder %s22, 1
      %p125 = por %p123, %p124
      %p126 = scmp.ne.s32.totalorder %s117, %s118
      %p127 = scmp.eq.s32.totalorder %s22, 0
      %p128 = por %p126, %p127
      %p129 = scmp.ne.s32.totalorder %s117, %s118
      %p130 = scmp.eq.s32.totalorder %s23, 1
      %p131 = por %p129, %p130
      %p133 = scmp.ne.s32.totalorder %s118, %s132
      %p134 = scmp.eq.s32.totalorder %s23, 0
      %p135 = por %p133, %p134
      %s136 = ssub.s32 %s24, %s36
      %s137 = ssub.s32 %s25, %s32
      %s138 = sor.u32 %s136, %s137
      %p139 = scmp.eq.s32.totalorder %s138, 0
      %s141 = sadd.s32 %s140, 1
      %s142 = scalar_select %p139, %s140, %s141
      %p145 = pneg %p139
      %p146 = scmp.eq.s32.totalorder %s17, 1
      %p147 = por %p145, %p146
      %p148 = scmp.ne.s32.totalorder %s140, %s143
      %p149 = scmp.eq.s32.totalorder %s17, 0
      %p150 = por %p148, %p149
      %p151 = scmp.ne.s32.totalorder %s140, %s143
      %p152 = scmp.eq.s32.totalorder %s22, 1
      %p153 = por %p151, %p152
      %p154 = scmp.ne.s32.totalorder %s143, %s144
      %p155 = scmp.eq.s32.totalorder %s22, 0
      %p156 = por %p154, %p155
      %p157 = scmp.ne.s32.totalorder %s143, %s144
      %p158 = scmp.eq.s32.totalorder %s23, 1
      %p159 = por %p157, %p158
      %p161 = scmp.ne.s32.totalorder %s144, %s160
      %p162 = scmp.eq.s32.totalorder %s23, 0
      %p163 = por %p161, %p162
      %p164 = scmp.le.s32.totalorder 1, %s17
      %p165 = scmp.lt.s32.totalorder %s17, 3
      %p166 = pnand %p164, %p165
      %p167 = pneg %p166
      // Predicated region
      $region9: #{upsample_block.1} parent=5 // pred_check
        _
      $region10: #{upsample_block.1} parent=5 // pred_check_branch
        %169 = sbr.rel (%p166) target = $region12
      $region11: #{upsample_block.1} parent=5 // pred_region
        %s170 = ssub.s32 %s17, 1
        // Predicated region
        $region13: #{upsample_block.1} parent=11 // pred_check
          %p171 = pneg %p55
        $region14: #{upsample_block.1} parent=11 // pred_check_branch
          %173 = sbr.rel (%p171) target = $region16
        $region15: #{upsample_block.1} parent=11 // pred_region
          %s174 = smul.u32 16, %s26
          %p175 = scmp.lt.s32.totalorder %s174, 15
          %s176 = scalar_select %p175, %s174, 15
          %s177 = smul.addr %s176, 5
          %s178 = smul.addr %s177, 4
          %s179 = scalar_lea.vmem %s0, %s178
          %s180 = smul.u32 16, %s26
        $region16: #{upsample_block.1} parent=11 // pred_fallthru
          _
        // Predicated region
        $region17: #{upsample_block.1} parent=11 // pred_check
          %p181 = pneg %p128
        $region18: #{upsample_block.1} parent=11 // pred_check_branch
          %183 = sbr.rel (%p181) target = $region20
        $region19: #{upsample_block.1} parent=11 // pred_region
          _
        $region20: #{upsample_block.1} parent=11 // pred_fallthru
          _
      $region12: #{upsample_block.1} parent=5 // pred_fallthru
        _
      %p184 = scmp.lt.s32.totalorder %s17, 2
      // Predicated region
      $region21: #{upsample_block.1} parent=5 // pred_check
        %p185 = pneg %p184
      $region22: #{upsample_block.1} parent=5 // pred_check_branch
        %187 = sbr.rel (%p185) target = $region24
      $region23: #{upsample_block.1} parent=5 // pred_region
        // Predicated region
        $region25: #{upsample_block.1} parent=23 // pred_check
          %p188 = pneg %p75
        $region26: #{upsample_block.1} parent=23 // pred_check_branch
          %190 = sbr.rel (%p188) target = $region28
        $region27: #{upsample_block.1} parent=23 // pred_region
          %s191 = sand.u32 %s65, 1
          %s192 = scalar_lea.sflag [#allocation4], %s191
          %s193 = sand.u32 %s65, 1
          %s194 = smul.addr %s193, 288
          %s195 = scalar_lea.vmem [#allocation3], %s194
          %s197 = ssub.s32 4608, 4608
          %198 = vsyncadd %s192, %s197
          %s199 = smul.addr %s25, 64
          %s200 = scalar_lea.hbm %s1, %s199
          %s201 = sshll.u32 %s195, 4
          %s202 = int_to_ptr.vmem [resolvable:$true] %s201
          %207 = dma.hbm_to_vmem [thread:$0]  %s200, 4608, %s202, %s192, 128, 64, 4
        $region28: #{upsample_block.1} parent=23 // pred_fallthru
          _
        // Predicated region
        $region29: #{upsample_block.1} parent=23 // pred_check
          %p208 = pneg %p101
        $region30: #{upsample_block.1} parent=23 // pred_check_branch
          %210 = sbr.rel (%p208) target = $region32
        $region31: #{upsample_block.1} parent=23 // pred_region
          %s211 = sand.u32 %s91, 1
          %s212 = scalar_lea.sflag [#allocation6], %s211
          %s213 = sand.u32 %s91, 1
          %s214 = scalar_lea.vmem [#allocation5], %s213
          %s216 = ssub.s32 16, 16
          %217 = vsyncadd %s212, %s216
          %s218 = smul.addr %s25, 16
          %s219 = scalar_lea.hbm %s2, %s218
          %s221 = sshll.u32 %s214, 4
          %s222 = int_to_ptr.vmem [resolvable:$true] %s221
          %224 = dma.hbm_to_vmem [thread:$0]  %s219, 16, %s222, %s212
        $region32: #{upsample_block.1} parent=23 // pred_fallthru
          _
      $region24: #{upsample_block.1} parent=5 // pred_fallthru
        _
      %p225 = scmp.le.s32.totalorder 1, %s17
      %p226 = scmp.lt.s32.totalorder %s17, 3
      %p227 = pnand %p225, %p226
      %p228 = pneg %p227
      // Predicated region
      $region33: #{upsample_block.1} parent=5 // pred_check
        _
      $region34: #{upsample_block.1} parent=5 // pred_check_branch
        %230 = sbr.rel (%p227) target = $region36
      $region35: #{upsample_block.1} parent=5 // pred_region
        %s231 = ssub.s32 %s17, 1
        %s232 = sand.u32 %s68, 1
        %s233 = scalar_lea.sflag [#allocation4], %s232
        %s234 = sand.u32 %s68, 1
        %s235 = smul.addr %s234, 288
        %s236 = scalar_lea.vmem [#allocation3], %s235
        // Predicated region
        $region37: #{upsample_block.1} parent=35 // pred_check
          %p237 = pneg %p81
        $region38: #{upsample_block.1} parent=35 // pred_check_branch
          %239 = sbr.rel (%p237) target = $region40
        $region39: #{upsample_block.1} parent=35 // pred_region
          %240 = dma.done %s233, 4608
        $region40: #{upsample_block.1} parent=35 // pred_fallthru
          _
        %s241 = sand.u32 %s94, 1
        %s242 = scalar_lea.sflag [#allocation6], %s241
        %s243 = sand.u32 %s94, 1
        %s244 = scalar_lea.vmem [#allocation5], %s243
        // Predicated region
        $region41: #{upsample_block.1} parent=35 // pred_check
          %p245 = pneg %p107
        $region42: #{upsample_block.1} parent=35 // pred_check_branch
          %247 = sbr.rel (%p245) target = $region44
        $region43: #{upsample_block.1} parent=35 // pred_region
          %248 = dma.done %s242, 16
        $region44: #{upsample_block.1} parent=35 // pred_fallthru
          _
        %s249 = smul.u32 16, %s26
        %p250 = scmp.lt.s32.totalorder %s249, 15
        %s251 = scalar_select %p250, %s249, 15
        %s252 = smul.addr %s251, 5
        %s253 = smul.addr %s252, 4
        %s254 = scalar_lea.vmem %s0, %s253
        %p255 = pneg %p55
        %p256 = pneg %p52
        %s257 = sand.u32 %s68, 1
        %s258 = scalar_lea.sflag [#allocation4], %s257
        %s259 = sand.u32 %s68, 1
        %s260 = smul.addr %s259, 288
        %s261 = scalar_lea.vmem [#allocation3], %s260
        %p262 = pneg %p81
        %p263 = pneg %p78
        %s264 = sand.u32 %s94, 1
        %s265 = scalar_lea.sflag [#allocation6], %s264
        %s266 = sand.u32 %s94, 1
        %s267 = scalar_lea.vmem [#allocation5], %s266
        %p268 = pneg %p107
        %p269 = pneg %p104
        %p270 = pneg %p128
        %p271 = pneg %p125
        %p272 = pneg %p156
        %p273 = pneg %p153
        %s274 = sand.u32 %s143, 1
        %s275 = sand.u32 %s143, 1
        %s276 = smul.addr %s275, 128
        %s277 = scalar_lea.vmem [#allocation7], %s276
        %s278 = smul.u32 16, %s26
        %p279 = scmp.lt.s32.totalorder %s278, 15
        %s280 = scalar_select %p279, %s278, 15
        %s281 = smul.addr %s280, 5
        %s282 = smul.addr %s281, 4
        %s283 = scalar_lea.vmem %s0, %s282
        %s284 = smul.u32 16, %s26
        %s285 = smul.u32 16, %s26
        %v287 = vld [vmem:[%s283] sm:$0xff]
        %v288 = vld [vmem:[%s283 + $0x8] sm:$0xff]
        %v289 = vld [vmem:[%s283 + $0x10] sm:$0xf]
        %v290 = vld [vmem:[%s283 + $0x14] sm:$0xff]
        %v291 = vld [vmem:[%s283 + $0x1c] sm:$0xff]
        %v292 = vld [vmem:[%s283 + $0x24] sm:$0xf]
        %v293 = vld [vmem:[%s283 + $0x28] sm:$0xff]
        %v294 = vld [vmem:[%s283 + $0x30] sm:$0xff]
        %v295 = vld [vmem:[%s283 + $0x38] sm:$0xf]
        %v296 = vld [vmem:[%s283 + $0x3c] sm:$0xff]
        %v297 = vld [vmem:[%s283 + $0x44] sm:$0xff]
        %v298 = vld [vmem:[%s283 + $0x4c] sm:$0xf]
        %v299 = vld [vmem:[%s283 + $0x50] sm:$0xff]
        %v300 = vld [vmem:[%s283 + $0x58] sm:$0xff]
        %v301 = vld [vmem:[%s283 + $0x60] sm:$0xf]
        %v302 = vld [vmem:[%s283 + $0x64] sm:$0xff]
        %v303 = vld [vmem:[%s283 + $0x6c] sm:$0xff]
        %v304 = vld [vmem:[%s283 + $0x74] sm:$0xf]
        %v305 = vld [vmem:[%s283 + $0x78] sm:$0xff]
        %v306 = vld [vmem:[%s283 + $0x80] sm:$0xff]
        %v307 = vld [vmem:[%s283 + $0x88] sm:$0xf]
        %v308 = vld [vmem:[%s283 + $0x8c] sm:$0xff]
        %v309 = vld [vmem:[%s283 + $0x94] sm:$0xff]
        %v310 = vld [vmem:[%s283 + $0x9c] sm:$0xf]
        %v311 = vld [vmem:[%s283 + $0xa0] sm:$0xff]
        %v312 = vld [vmem:[%s283 + $0xa8] sm:$0xff]
        %v313 = vld [vmem:[%s283 + $0xb0] sm:$0xf]
        %v314 = vld [vmem:[%s283 + $0xb4] sm:$0xff]
        %v315 = vld [vmem:[%s283 + $0xbc] sm:$0xff]
        %v316 = vld [vmem:[%s283 + $0xc4] sm:$0xf]
        %v317 = vld [vmem:[%s283 + $0xc8] sm:$0xff]
        %v318 = vld [vmem:[%s283 + $0xd0] sm:$0xff]
        %v319 = vld [vmem:[%s283 + $0xd8] sm:$0xf]
        %v320 = vld [vmem:[%s283 + $0xdc] sm:$0xff]
        %v321 = vld [vmem:[%s283 + $0xe4] sm:$0xff]
        %v322 = vld [vmem:[%s283 + $0xec] sm:$0xf]
        %v323 = vld [vmem:[%s283 + $0xf0] sm:$0xff]
        %v324 = vld [vmem:[%s283 + $0xf8] sm:$0xff]
        %v325 = vld [vmem:[%s283 + $0x100] sm:$0xf]
        %v326 = vld [vmem:[%s283 + $0x104] sm:$0xff]
        %v327 = vld [vmem:[%s283 + $0x10c] sm:$0xff]
        %v328 = vld [vmem:[%s283 + $0x114] sm:$0xf]
        %v329 = vld [vmem:[%s283 + $0x118] sm:$0xff]
        %v330 = vld [vmem:[%s283 + $0x120] sm:$0xff]
        %v331 = vld [vmem:[%s283 + $0x128] sm:$0xf]
        %v332 = vld [vmem:[%s283 + $0x12c] sm:$0xff]
        %v333 = vld [vmem:[%s283 + $0x134] sm:$0xff]
        %v334 = vld [vmem:[%s283 + $0x13c] sm:$0xf]
        %v335 = vld [vmem:[%s236] sm:$0xf]
        %v336 = vld [vmem:[%s236 + $0x4] sm:$0xf]
        %v337 = vld [vmem:[%s236 + $0x8] sm:$0xf]
        %v338 = vld [vmem:[%s236 + $0xc] sm:$0xf]
        %v339 = vld [vmem:[%s236 + $0x10] sm:$0xf]
        %v340 = vld [vmem:[%s236 + $0x14] sm:$0xf]
        %v341 = vld [vmem:[%s236 + $0x18] sm:$0xf]
        %v342 = vld [vmem:[%s236 + $0x1c] sm:$0xf]
        %v343 = vld [vmem:[%s236 + $0x20] sm:$0xf]
        %v344 = vld [vmem:[%s236 + $0x24] sm:$0xf]
        %v345 = vld [vmem:[%s236 + $0x28] sm:$0xf]
        %v346 = vld [vmem:[%s236 + $0x2c] sm:$0xf]
        %v347 = vld [vmem:[%s236 + $0x30] sm:$0xf]
        %v348 = vld [vmem:[%s236 + $0x34] sm:$0xf]
        %v349 = vld [vmem:[%s236 + $0x38] sm:$0xf]
        %v350 = vld [vmem:[%s236 + $0x3c] sm:$0xf]
        %v351 = vld [vmem:[%s236 + $0x40] sm:$0xf]
        %v352 = vld [vmem:[%s236 + $0x44] sm:$0xf]
        %v353 = vld [vmem:[%s236 + $0x48] sm:$0xf]
        %v354 = vld [vmem:[%s236 + $0x4c] sm:$0xf]
        %v355 = vld [vmem:[%s236 + $0x50] sm:$0xf]
        %v356 = vld [vmem:[%s236 + $0x54] sm:$0xf]
        %v357 = vld [vmem:[%s236 + $0x58] sm:$0xf]
        %v358 = vld [vmem:[%s236 + $0x5c] sm:$0xf]
        %v359 = vld [vmem:[%s236 + $0x60] sm:$0xf]
        %v360 = vld [vmem:[%s236 + $0x64] sm:$0xf]
        %v361 = vld [vmem:[%s236 + $0x68] sm:$0xf]
        %v362 = vld [vmem:[%s236 + $0x6c] sm:$0xf]
        %v363 = vld [vmem:[%s236 + $0x70] sm:$0xf]
        %v364 = vld [vmem:[%s236 + $0x74] sm:$0xf]
        %v365 = vld [vmem:[%s236 + $0x78] sm:$0xf]
        %v366 = vld [vmem:[%s236 + $0x7c] sm:$0xf]
        %v367 = vld [vmem:[%s236 + $0x80] sm:$0xf]
        %v368 = vld [vmem:[%s236 + $0x84] sm:$0xf]
        %v369 = vld [vmem:[%s236 + $0x88] sm:$0xf]
        %v370 = vld [vmem:[%s236 + $0x8c] sm:$0xf]
        %v371 = vld [vmem:[%s236 + $0x90] sm:$0xf]
        %v372 = vld [vmem:[%s236 + $0x94] sm:$0xf]
        %v373 = vld [vmem:[%s236 + $0x98] sm:$0xf]
        %v374 = vld [vmem:[%s236 + $0x9c] sm:$0xf]
        %v375 = vld [vmem:[%s236 + $0xa0] sm:$0xf]
        %v376 = vld [vmem:[%s236 + $0xa4] sm:$0xf]
        %v377 = vld [vmem:[%s236 + $0xa8] sm:$0xf]
        %v378 = vld [vmem:[%s236 + $0xac] sm:$0xf]
        %v379 = vld [vmem:[%s236 + $0xb0] sm:$0xf]
        %v380 = vld [vmem:[%s236 + $0xb4] sm:$0xf]
        %v381 = vld [vmem:[%s236 + $0xb8] sm:$0xf]
        %v382 = vld [vmem:[%s236 + $0xbc] sm:$0xf]
        %v383 = vld [vmem:[%s236 + $0xc0] sm:$0xf]
        %v384 = vld [vmem:[%s236 + $0xc4] sm:$0xf]
        %v385 = vld [vmem:[%s236 + $0xc8] sm:$0xf]
        %v386 = vld [vmem:[%s236 + $0xcc] sm:$0xf]
        %v387 = vld [vmem:[%s236 + $0xd0] sm:$0xf]
        %v388 = vld [vmem:[%s236 + $0xd4] sm:$0xf]
        %v389 = vld [vmem:[%s236 + $0xd8] sm:$0xf]
        %v390 = vld [vmem:[%s236 + $0xdc] sm:$0xf]
        %v391 = vld [vmem:[%s236 + $0xe0] sm:$0xf]
        %v392 = vld [vmem:[%s236 + $0xe4] sm:$0xf]
        %v393 = vld [vmem:[%s236 + $0xe8] sm:$0xf]
        %v394 = vld [vmem:[%s236 + $0xec] sm:$0xf]
        %v395 = vld [vmem:[%s236 + $0xf0] sm:$0xf]
        %v396 = vld [vmem:[%s236 + $0xf4] sm:$0xf]
        %v397 = vld [vmem:[%s236 + $0xf8] sm:$0xf]
        %v398 = vld [vmem:[%s236 + $0xfc] sm:$0xf]
        %v399 = vld [vmem:[%s236 + $0x100] sm:$0xf]
        %v400 = vld [vmem:[%s236 + $0x104] sm:$0xf]
        %v401 = vld [vmem:[%s236 + $0x108] sm:$0xf]
        %v402 = vld [vmem:[%s236 + $0x10c] sm:$0xf]
        %v403 = vld [vmem:[%s236 + $0x110] sm:$0xf]
        %v404 = vld [vmem:[%s236 + $0x114] sm:$0xf]
        %v405 = vld [vmem:[%s236 + $0x118] sm:$0xf]
        %v406 = vld [vmem:[%s236 + $0x11c] sm:$0xf]
        %v407 = vld [vmem:[%s244] sm:$0x1]
        %v409 = vlaneseq
        %v410 = vshrl.u32 %v409, 7
        %v411 = vsub.s32 0, %v410
        %v412 = vrot.slane %v407, %v411
        %v462 = vunpack.c.l.b16 %v287
        %v463 = vunpack.c.h.b16 %v287
        %v464 = vunpack.c.l.b16 %v288
        %v465 = vunpack.c.h.b16 %v288
        %v466 = vunpack.c.l.b16 %v289
        %v467 = vunpack.c.l.b16 %v290
        %v468 = vunpack.c.h.b16 %v290
        %v469 = vunpack.c.l.b16 %v291
        %v470 = vunpack.c.h.b16 %v291
        %v471 = vunpack.c.l.b16 %v292
        %v472 = vunpack.c.l.b16 %v293
        %v473 = vunpack.c.h.b16 %v293
        %v474 = vunpack.c.l.b16 %v294
        %v475 = vunpack.c.h.b16 %v294
        %v476 = vunpack.c.l.b16 %v295
        %v477 = vunpack.c.l.b16 %v296
        %v478 = vunpack.c.h.b16 %v296
        %v479 = vunpack.c.l.b16 %v297
        %v480 = vunpack.c.h.b16 %v297
        %v481 = vunpack.c.l.b16 %v298
        %v482 = vunpack.c.l.b16 %v299
        %v483 = vunpack.c.h.b16 %v299
        %v484 = vunpack.c.l.b16 %v300
        %v485 = vunpack.c.h.b16 %v300
        %v486 = vunpack.c.l.b16 %v301
        %v487 = vunpack.c.l.b16 %v302
        %v488 = vunpack.c.h.b16 %v302
        %v489 = vunpack.c.l.b16 %v303
        %v490 = vunpack.c.h.b16 %v303
        %v491 = vunpack.c.l.b16 %v304
        %v492 = vunpack.c.l.b16 %v305
        %v493 = vunpack.c.h.b16 %v305
        %v494 = vunpack.c.l.b16 %v306
        %v495 = vunpack.c.h.b16 %v306
        %v496 = vunpack.c.l.b16 %v307
        %v497 = vunpack.c.l.b16 %v308
        %v498 = vunpack.c.h.b16 %v308
        %v499 = vunpack.c.l.b16 %v309
        %v500 = vunpack.c.h.b16 %v309
        %v501 = vunpack.c.l.b16 %v310
        %v502 = vunpack.c.l.b16 %v311
        %v503 = vunpack.c.h.b16 %v311
        %v504 = vunpack.c.l.b16 %v312
        %v505 = vunpack.c.h.b16 %v312
        %v506 = vunpack.c.l.b16 %v313
        %v507 = vunpack.c.l.b16 %v314
        %v508 = vunpack.c.h.b16 %v314
        %v509 = vunpack.c.l.b16 %v315
        %v510 = vunpack.c.h.b16 %v315
        %v511 = vunpack.c.l.b16 %v316
        %v512 = vunpack.c.l.b16 %v317
        %v513 = vunpack.c.h.b16 %v317
        %v514 = vunpack.c.l.b16 %v318
        %v515 = vunpack.c.h.b16 %v318
        %v516 = vunpack.c.l.b16 %v319
        %v517 = vunpack.c.l.b16 %v320
        %v518 = vunpack.c.h.b16 %v320
        %v519 = vunpack.c.l.b16 %v321
        %v520 = vunpack.c.h.b16 %v321
        %v521 = vunpack.c.l.b16 %v322
        %v522 = vunpack.c.l.b16 %v323
        %v523 = vunpack.c.h.b16 %v323
        %v524 = vunpack.c.l.b16 %v324
        %v525 = vunpack.c.h.b16 %v324
        %v526 = vunpack.c.l.b16 %v325
        %v527 = vunpack.c.l.b16 %v326
        %v528 = vunpack.c.h.b16 %v326
        %v529 = vunpack.c.l.b16 %v327
        %v530 = vunpack.c.h.b16 %v327
        %v531 = vunpack.c.l.b16 %v328
        %v532 = vunpack.c.l.b16 %v329
        %v533 = vunpack.c.h.b16 %v329
        %v534 = vunpack.c.l.b16 %v330
        %v535 = vunpack.c.h.b16 %v330
        %v536 = vunpack.c.l.b16 %v331
        %v537 = vunpack.c.l.b16 %v332
        %v538 = vunpack.c.h.b16 %v332
        %v539 = vunpack.c.l.b16 %v333
        %v540 = vunpack.c.h.b16 %v333
        %v541 = vunpack.c.l.b16 %v334
        %v542 = vpack.c.b16 %v467, %v462
        %v543 = vpack.c.b16 %v468, %v463
        %v544 = vpack.c.b16 %v469, %v464
        %v545 = vpack.c.b16 %v470, %v465
        %v546 = vpack.c.b16 %v471, %v466
        %v547 = vpack.c.b16 %v477, %v472
        %v548 = vpack.c.b16 %v478, %v473
        %v549 = vpack.c.b16 %v479, %v474
        %v550 = vpack.c.b16 %v480, %v475
        %v551 = vpack.c.b16 %v481, %v476
        %v552 = vpack.c.b16 %v487, %v482
        %v553 = vpack.c.b16 %v488, %v483
        %v554 = vpack.c.b16 %v489, %v484
        %v555 = vpack.c.b16 %v490, %v485
        %v556 = vpack.c.b16 %v491, %v486
        %v557 = vpack.c.b16 %v497, %v492
        %v558 = vpack.c.b16 %v498, %v493
        %v559 = vpack.c.b16 %v499, %v494
        %v560 = vpack.c.b16 %v500, %v495
        %v561 = vpack.c.b16 %v501, %v496
        %v562 = vpack.c.b16 %v507, %v502
        %v563 = vpack.c.b16 %v508, %v503
        %v564 = vpack.c.b16 %v509, %v504
        %v565 = vpack.c.b16 %v510, %v505
        %v566 = vpack.c.b16 %v511, %v506
        %v567 = vpack.c.b16 %v517, %v512
        %v568 = vpack.c.b16 %v518, %v513
        %v569 = vpack.c.b16 %v519, %v514
        %v570 = vpack.c.b16 %v520, %v515
        %v571 = vpack.c.b16 %v521, %v516
        %v572 = vpack.c.b16 %v527, %v522
        %v573 = vpack.c.b16 %v528, %v523
        %v574 = vpack.c.b16 %v529, %v524
        %v575 = vpack.c.b16 %v530, %v525
        %v576 = vpack.c.b16 %v531, %v526
        %v577 = vpack.c.b16 %v537, %v532
        %v578 = vpack.c.b16 %v538, %v533
        %v579 = vpack.c.b16 %v539, %v534
        %v580 = vpack.c.b16 %v540, %v535
        %v581 = vpack.c.b16 %v541, %v536
        %v686 = vunpack.c.l.b16 %v335
        %v687 = vunpack.c.l.b16 %v336
        %v688 = vunpack.c.l.b16 %v337
        %v689 = vunpack.c.l.b16 %v338
        %v690 = vunpack.c.l.b16 %v339
        %v691 = vunpack.c.l.b16 %v340
        %v692 = vunpack.c.l.b16 %v341
        %v693 = vunpack.c.l.b16 %v342
        %v694 = vunpack.c.l.b16 %v343
        %v695 = vunpack.c.l.b16 %v344
        %v696 = vunpack.c.l.b16 %v345
        %v697 = vunpack.c.l.b16 %v346
        %v698 = vunpack.c.l.b16 %v347
        %v699 = vunpack.c.l.b16 %v348
        %v700 = vunpack.c.l.b16 %v349
        %v701 = vunpack.c.l.b16 %v350
        %v702 = vunpack.c.l.b16 %v351
        %v703 = vunpack.c.l.b16 %v352
        %v704 = vunpack.c.l.b16 %v353
        %v705 = vunpack.c.l.b16 %v354
        %v706 = vunpack.c.l.b16 %v355
        %v707 = vunpack.c.l.b16 %v356
        %v708 = vunpack.c.l.b16 %v357
        %v709 = vunpack.c.l.b16 %v358
        %v710 = vunpack.c.l.b16 %v359
        %v711 = vunpack.c.l.b16 %v360
        %v712 = vunpack.c.l.b16 %v361
        %v713 = vunpack.c.l.b16 %v362
        %v714 = vunpack.c.l.b16 %v363
        %v715 = vunpack.c.l.b16 %v364
        %v716 = vunpack.c.l.b16 %v365
        %v717 = vunpack.c.l.b16 %v366
        %v718 = vunpack.c.l.b16 %v367
        %v719 = vunpack.c.l.b16 %v368
        %v720 = vunpack.c.l.b16 %v369
        %v721 = vunpack.c.l.b16 %v370
        %v722 = vunpack.c.l.b16 %v371
        %v723 = vunpack.c.l.b16 %v372
        %v724 = vunpack.c.l.b16 %v373
        %v725 = vunpack.c.l.b16 %v374
        %v726 = vunpack.c.l.b16 %v375
        %v727 = vunpack.c.l.b16 %v376
        %v728 = vunpack.c.l.b16 %v377
        %v729 = vunpack.c.l.b16 %v378
        %v730 = vunpack.c.l.b16 %v379
        %v731 = vunpack.c.l.b16 %v380
        %v732 = vunpack.c.l.b16 %v381
        %v733 = vunpack.c.l.b16 %v382
        %v734 = vunpack.c.l.b16 %v383
        %v735 = vunpack.c.l.b16 %v384
        %v736 = vunpack.c.l.b16 %v385
        %v737 = vunpack.c.l.b16 %v386
        %v738 = vunpack.c.l.b16 %v387
        %v739 = vunpack.c.l.b16 %v388
        %v740 = vunpack.c.l.b16 %v389
        %v741 = vunpack.c.l.b16 %v390
        %v742 = vunpack.c.l.b16 %v391
        %v743 = vunpack.c.l.b16 %v392
        %v744 = vunpack.c.l.b16 %v393
        %v745 = vunpack.c.l.b16 %v394
        %v746 = vunpack.c.l.b16 %v395
        %v747 = vunpack.c.l.b16 %v396
        %v748 = vunpack.c.l.b16 %v397
        %v749 = vunpack.c.l.b16 %v398
        %v750 = vunpack.c.l.b16 %v399
        %v751 = vunpack.c.l.b16 %v400
        %v752 = vunpack.c.l.b16 %v401
        %v753 = vunpack.c.l.b16 %v402
        %v754 = vunpack.c.l.b16 %v403
        %v755 = vunpack.c.l.b16 %v404
        %v756 = vunpack.c.l.b16 %v405
        %v757 = vunpack.c.l.b16 %v406
        %v758 = vpack.c.b16 %v687, %v686
        %v759 = vpack.c.b16 %v689, %v688
        %v760 = vpack.c.b16 %v691, %v690
        %v761 = vpack.c.b16 %v693, %v692
        %v762 = vpack.c.b16 %v695, %v694
        %v763 = vpack.c.b16 %v697, %v696
        %v764 = vpack.c.b16 %v699, %v698
        %v765 = vpack.c.b16 %v701, %v700
        %v766 = vpack.c.b16 %v703, %v702
        %v767 = vpack.c.b16 %v705, %v704
        %v768 = vpack.c.b16 %v707, %v706
        %v769 = vpack.c.b16 %v709, %v708
        %v770 = vpack.c.b16 %v711, %v710
        %v771 = vpack.c.b16 %v713, %v712
        %v772 = vpack.c.b16 %v715, %v714
        %v773 = vpack.c.b16 %v717, %v716
        %v774 = vpack.c.b16 %v719, %v718
        %v775 = vpack.c.b16 %v721, %v720
        %v776 = vpack.c.b16 %v723, %v722
        %v777 = vpack.c.b16 %v725, %v724
        %v778 = vpack.c.b16 %v727, %v726
        %v779 = vpack.c.b16 %v729, %v728
        %v780 = vpack.c.b16 %v731, %v730
        %v781 = vpack.c.b16 %v733, %v732
        %v782 = vpack.c.b16 %v735, %v734
        %v783 = vpack.c.b16 %v737, %v736
        %v784 = vpack.c.b16 %v739, %v738
        %v785 = vpack.c.b16 %v741, %v740
        %v786 = vpack.c.b16 %v743, %v742
        %v787 = vpack.c.b16 %v745, %v744
        %v788 = vpack.c.b16 %v747, %v746
        %v789 = vpack.c.b16 %v749, %v748
        %v790 = vpack.c.b16 %v751, %v750
        %v791 = vpack.c.b16 %v753, %v752
        %v792 = vpack.c.b16 %v755, %v754
        %v793 = vpack.c.b16 %v757, %v756
        %vm830 = vcmask 523264
        %v832 = vsel %vm830, %v546, 0
        %v835 = vsel %vm830, %v551, 0
        %v838 = vsel %vm830, %v556, 0
        %v841 = vsel %vm830, %v561, 0
        %v844 = vsel %vm830, %v566, 0
        %v847 = vsel %vm830, %v571, 0
        %v850 = vsel %vm830, %v576, 0
        %v853 = vsel %vm830, %v581, 0
        %855 = vmatprep.subr.bf16.mxu0 0
        %856 = vmatpush1.bf16.msra.mxu0 %v765
        %857 = vmatprep.subr.bf16.mxu0 0
        %858 = vmatpush1.bf16.msra.mxu0 %v764
        %859 = vmatprep.subr.bf16.mxu0 0
        %860 = vmatpush1.bf16.msra.mxu0 %v763
        %861 = vmatprep.subr.bf16.mxu0 0
        %862 = vmatpush1.bf16.msra.mxu0 %v762
        %863 = vmatprep.subr.bf16.mxu0 0
        %864 = vmatpush1.bf16.msra.mxu0 %v761
        %865 = vmatprep.subr.bf16.mxu0 0
        %866 = vmatpush1.bf16.msra.mxu0 %v760
        %867 = vmatprep.subr.bf16.mxu0 0
        %868 = vmatpush1.bf16.msra.mxu0 %v759
        %869 = vmatprep.subr.bf16.mxu0 0
        %870 = vmatpush1.bf16.msra.mxu0 %v758
        %871 = vmatprep.subr.bf16.mxu0 0
        %872 = vmatpush2.bf16.msra.mxu0 %v773
        %873 = vmatprep.subr.bf16.mxu0 0
        %874 = vmatpush2.bf16.msra.mxu0 %v772
        %875 = vmatprep.subr.bf16.mxu0 0
        %876 = vmatpush2.bf16.msra.mxu0 %v771
        %877 = vmatprep.subr.bf16.mxu0 0
        %878 = vmatpush2.bf16.msra.mxu0 %v770
        %879 = vmatprep.subr.bf16.mxu0 0
        %880 = vmatpush2.bf16.msra.mxu0 %v769
        %881 = vmatprep.subr.bf16.mxu0 0
        %882 = vmatpush2.bf16.msra.mxu0 %v768
        %883 = vmatprep.subr.bf16.mxu0 0
        %884 = vmatpush2.bf16.msra.mxu0 %v767
        %885 = vmatprep.subr.bf16.mxu0 0
        %886 = vmatpush2.bf16.msra.mxu0 %v766
        %887 = vmatprep.mubr.bf16.mxu0 %v543
        %888 = vmatmul.mubr.bf16.gmra.mxu0 %v542
        %v889 = vpop.f32.mrf.mxu0
        %v890 = vadd.f32 %v412, %v889
        %v891 = vpop.f32.mrf.mxu0
        %v892 = vpop.f32.mrf.mxu0
        %v893 = vadd.f32 %v412, %v892
        %v894 = vpop.f32.mrf.mxu0
        %895 = vmatprep.mubr.bf16.mxu0 %v548
        %896 = vmatmul.mubr.bf16.gmra.mxu0 %v547
        %v897 = vpop.f32.mrf.mxu0
        %v898 = vadd.f32 %v412, %v897
        %v899 = vpop.f32.mrf.mxu0
        %v900 = vpop.f32.mrf.mxu0
        %v901 = vadd.f32 %v412, %v900
        %v902 = vpop.f32.mrf.mxu0
        %903 = vmatprep.mubr.bf16.mxu0 %v553
        %904 = vmatmul.mubr.bf16.gmra.mxu0 %v552
        %v905 = vpop.f32.mrf.mxu0
        %v906 = vadd.f32 %v412, %v905
        %v907 = vpop.f32.mrf.mxu0
        %v908 = vpop.f32.mrf.mxu0
        %v909 = vadd.f32 %v412, %v908
        %v910 = vpop.f32.mrf.mxu0
        %911 = vmatprep.mubr.bf16.mxu0 %v558
        %912 = vmatmul.mubr.bf16.gmra.mxu0 %v557
        %v913 = vpop.f32.mrf.mxu0
        %v914 = vadd.f32 %v412, %v913
        %v915 = vpop.f32.mrf.mxu0
        %v916 = vpop.f32.mrf.mxu0
        %v917 = vadd.f32 %v412, %v916
        %v918 = vpop.f32.mrf.mxu0
        %919 = vmatprep.mubr.bf16.mxu0 %v563
        %920 = vmatmul.mubr.bf16.gmra.mxu0 %v562
        %v921 = vpop.f32.mrf.mxu0
        %v922 = vadd.f32 %v412, %v921
        %v923 = vpop.f32.mrf.mxu0
        %v924 = vpop.f32.mrf.mxu0
        %v925 = vadd.f32 %v412, %v924
        %v926 = vpop.f32.mrf.mxu0
        %927 = vmatprep.mubr.bf16.mxu0 %v568
        %928 = vmatmul.mubr.bf16.gmra.mxu0 %v567
        %v929 = vpop.f32.mrf.mxu0
        %v930 = vadd.f32 %v412, %v929
        %v931 = vpop.f32.mrf.mxu0
        %v932 = vpop.f32.mrf.mxu0
        %v933 = vadd.f32 %v412, %v932
        %v934 = vpop.f32.mrf.mxu0
        %935 = vmatprep.mubr.bf16.mxu0 %v573
        %936 = vmatmul.mubr.bf16.gmra.mxu0 %v572
        %v937 = vpop.f32.mrf.mxu0
        %v938 = vadd.f32 %v412, %v937
        %v939 = vpop.f32.mrf.mxu0
        %v940 = vpop.f32.mrf.mxu0
        %v941 = vadd.f32 %v412, %v940
        %v942 = vpop.f32.mrf.mxu0
        %943 = vmatprep.mubr.bf16.mxu0 %v578
        %944 = vmatmul.mubr.bf16.gmra.mxu0 %v577
        %v945 = vpop.f32.mrf.mxu0
        %v946 = vadd.f32 %v412, %v945
        %v947 = vpop.f32.mrf.mxu0
        %v948 = vpop.f32.mrf.mxu0
        %v949 = vadd.f32 %v412, %v948
        %v950 = vpop.f32.mrf.mxu0
        %951 = vdwg.mxu0
        %952 = vmatprep.subr.bf16.mxu0 0
        %953 = vmatpush1.bf16.msra.mxu0 %v781
        %954 = vmatprep.subr.bf16.mxu0 0
        %955 = vmatpush1.bf16.msra.mxu0 %v780
        %956 = vmatprep.subr.bf16.mxu0 0
        %957 = vmatpush1.bf16.msra.mxu0 %v779
        %958 = vmatprep.subr.bf16.mxu0 0
        %959 = vmatpush1.bf16.msra.mxu0 %v778
        %960 = vmatprep.subr.bf16.mxu0 0
        %961 = vmatpush1.bf16.msra.mxu0 %v777
        %962 = vmatprep.subr.bf16.mxu0 0
        %963 = vmatpush1.bf16.msra.mxu0 %v776
        %964 = vmatprep.subr.bf16.mxu0 0
        %965 = vmatpush1.bf16.msra.mxu0 %v775
        %966 = vmatprep.subr.bf16.mxu0 0
        %967 = vmatpush1.bf16.msra.mxu0 %v774
        %968 = vmatprep.subr.bf16.mxu0 0
        %969 = vmatpush2.bf16.msra.mxu0 %v789
        %970 = vmatprep.subr.bf16.mxu0 0
        %971 = vmatpush2.bf16.msra.mxu0 %v788
        %972 = vmatprep.subr.bf16.mxu0 0
        %973 = vmatpush2.bf16.msra.mxu0 %v787
        %974 = vmatprep.subr.bf16.mxu0 0
        %975 = vmatpush2.bf16.msra.mxu0 %v786
        %976 = vmatprep.subr.bf16.mxu0 0
        %977 = vmatpush2.bf16.msra.mxu0 %v785
        %978 = vmatprep.subr.bf16.mxu0 0
        %979 = vmatpush2.bf16.msra.mxu0 %v784
        %980 = vmatprep.subr.bf16.mxu0 0
        %981 = vmatpush2.bf16.msra.mxu0 %v783
        %982 = vmatprep.subr.bf16.mxu0 0
        %983 = vmatpush2.bf16.msra.mxu0 %v782
        %984 = vmatprep.mubr.bf16.mxu0 %v545
        %985 = vmatmul.mubr.bf16.gmra.mxu0 %v544
        %v986 = vpop.f32.mrf.mxu0
        %v987 = vadd.f32 %v890, %v986
        %v988 = vpop.f32.mrf.mxu0
        %v989 = vpop.f32.mrf.mxu0
        %v990 = vadd.f32 %v893, %v989
        %v991 = vpop.f32.mrf.mxu0
        %992 = vmatprep.mubr.bf16.mxu0 %v550
        %993 = vmatmul.mubr.bf16.gmra.mxu0 %v549
        %v994 = vpop.f32.mrf.mxu0
        %v995 = vadd.f32 %v898, %v994
        %v996 = vpop.f32.mrf.mxu0
        %v997 = vpop.f32.mrf.mxu0
        %v998 = vadd.f32 %v901, %v997
        %v999 = vpop.f32.mrf.mxu0
        %1000 = vmatprep.mubr.bf16.mxu0 %v555
        %1001 = vmatmul.mubr.bf16.gmra.mxu0 %v554
        %v1002 = vpop.f32.mrf.mxu0
        %v1003 = vadd.f32 %v906, %v1002
        %v1004 = vpop.f32.mrf.mxu0
        %v1005 = vpop.f32.mrf.mxu0
        %v1006 = vadd.f32 %v909, %v1005
        %v1007 = vpop.f32.mrf.mxu0
        %1008 = vmatprep.mubr.bf16.mxu0 %v560
        %1009 = vmatmul.mubr.bf16.gmra.mxu0 %v559
        %v1010 = vpop.f32.mrf.mxu0
        %v1011 = vadd.f32 %v914, %v1010
        %v1012 = vpop.f32.mrf.mxu0
        %v1013 = vpop.f32.mrf.mxu0
        %v1014 = vadd.f32 %v917, %v1013
        %v1015 = vpop.f32.mrf.mxu0
        %1016 = vmatprep.mubr.bf16.mxu0 %v565
        %1017 = vmatmul.mubr.bf16.gmra.mxu0 %v564
        %v1018 = vpop.f32.mrf.mxu0
        %v1019 = vadd.f32 %v922, %v1018
        %v1020 = vpop.f32.mrf.mxu0
        %v1021 = vpop.f32.mrf.mxu0
        %v1022 = vadd.f32 %v925, %v1021
        %v1023 = vpop.f32.mrf.mxu0
        %1024 = vmatprep.mubr.bf16.mxu0 %v570
        %1025 = vmatmul.mubr.bf16.gmra.mxu0 %v569
        %v1026 = vpop.f32.mrf.mxu0
        %v1027 = vadd.f32 %v930, %v1026
        %v1028 = vpop.f32.mrf.mxu0
        %v1029 = vpop.f32.mrf.mxu0
        %v1030 = vadd.f32 %v933, %v1029
        %v1031 = vpop.f32.mrf.mxu0
        %1032 = vmatprep.mubr.bf16.mxu0 %v575
        %1033 = vmatmul.mubr.bf16.gmra.mxu0 %v574
        %v1034 = vpop.f32.mrf.mxu0
        %v1035 = vadd.f32 %v938, %v1034
        %v1036 = vpop.f32.mrf.mxu0
        %v1037 = vpop.f32.mrf.mxu0
        %v1038 = vadd.f32 %v941, %v1037
        %v1039 = vpop.f32.mrf.mxu0
        %1040 = vmatprep.mubr.bf16.mxu0 %v580
        %1041 = vmatmul.mubr.bf16.gmra.mxu0 %v579
        %v1042 = vpop.f32.mrf.mxu0
        %v1043 = vadd.f32 %v946, %v1042
        %v1044 = vpop.f32.mrf.mxu0
        %v1045 = vpop.f32.mrf.mxu0
        %v1046 = vadd.f32 %v949, %v1045
        %v1047 = vpop.f32.mrf.mxu0
        %1048 = vdwg.mxu0
        %1049 = vmatprep.subr.bf16.mxu0 0
        %1050 = vmatpush1.bf16.msra.mxu0 0
        %1051 = vmatprep.subr.bf16.mxu0 0
        %1052 = vmatpush1.bf16.msra.mxu0 0
        %1053 = vmatprep.subr.bf16.mxu0 0
        %1054 = vmatpush1.bf16.msra.mxu0 0
        %1055 = vmatprep.subr.bf16.mxu0 0
        %1056 = vmatpush1.bf16.msra.mxu0 0
        %1057 = vmatprep.subr.bf16.mxu0 0
        %1058 = vmatpush1.bf16.msra.mxu0 %v793
        %1059 = vmatprep.subr.bf16.mxu0 0
        %1060 = vmatpush1.bf16.msra.mxu0 %v792
        %1061 = vmatprep.subr.bf16.mxu0 0
        %1062 = vmatpush1.bf16.msra.mxu0 %v791
        %1063 = vmatprep.subr.bf16.mxu0 0
        %1064 = vmatpush1.bf16.msra.mxu0 %v790
        %1065 = vmatprep.subr.bf16.mxu0 0
        %1066 = vmatpush2.bf16.msra.mxu0 0
        %1067 = vmatprep.subr.bf16.mxu0 0
        %1068 = vmatpush2.bf16.msra.mxu0 0
        %1069 = vmatprep.subr.bf16.mxu0 0
        %1070 = vmatpush2.bf16.msra.mxu0 0
        %1071 = vmatprep.subr.bf16.mxu0 0
        %1072 = vmatpush2.bf16.msra.mxu0 0
        %1073 = vmatprep.subr.bf16.mxu0 0
        %1074 = vmatpush2.bf16.msra.mxu0 0
        %1075 = vmatprep.subr.bf16.mxu0 0
        %1076 = vmatpush2.bf16.msra.mxu0 0
        %1077 = vmatprep.subr.bf16.mxu0 0
        %1078 = vmatpush2.bf16.msra.mxu0 0
        %1079 = vmatprep.subr.bf16.mxu0 0
        %1080 = vmatpush2.bf16.msra.mxu0 0
        %1081 = vmatprep.mubr.bf16.mxu0 0
        %1082 = vmatmul.mubr.bf16.gmra.mxu0 %v832
        %v1083 = vpop.f32.mrf.mxu0
        %v1084 = vadd.f32 %v987, %v1083
        %v1085 = vpop.f32.mrf.mxu0
        %v1086 = vpop.f32.mrf.mxu0
        %v1087 = vadd.f32 %v990, %v1086
        %v1088 = vpop.f32.mrf.mxu0
        %1089 = vmatprep.mubr.bf16.mxu0 0
        %1090 = vmatmul.mubr.bf16.gmra.mxu0 %v835
        %v1091 = vpop.f32.mrf.mxu0
        %v1092 = vadd.f32 %v995, %v1091
        %v1093 = vpop.f32.mrf.mxu0
        %v1094 = vpop.f32.mrf.mxu0
        %v1095 = vadd.f32 %v998, %v1094
        %v1096 = vpop.f32.mrf.mxu0
        %1097 = vmatprep.mubr.bf16.mxu0 0
        %1098 = vmatmul.mubr.bf16.gmra.mxu0 %v838
        %v1099 = vpop.f32.mrf.mxu0
        %v1100 = vadd.f32 %v1003, %v1099
        %v1101 = vpop.f32.mrf.mxu0
        %v1102 = vpop.f32.mrf.mxu0
        %v1103 = vadd.f32 %v1006, %v1102
        %v1104 = vpop.f32.mrf.mxu0
        %1105 = vmatprep.mubr.bf16.mxu0 0
        %1106 = vmatmul.mubr.bf16.gmra.mxu0 %v841
        %v1107 = vpop.f32.mrf.mxu0
        %v1108 = vadd.f32 %v1011, %v1107
        %v1109 = vpop.f32.mrf.mxu0
        %v1110 = vpop.f32.mrf.mxu0
        %v1111 = vadd.f32 %v1014, %v1110
        %v1112 = vpop.f32.mrf.mxu0
        %1113 = vmatprep.mubr.bf16.mxu0 0
        %1114 = vmatmul.mubr.bf16.gmra.mxu0 %v844
        %v1115 = vpop.f32.mrf.mxu0
        %v1116 = vadd.f32 %v1019, %v1115
        %v1117 = vpop.f32.mrf.mxu0
        %v1118 = vpop.f32.mrf.mxu0
        %v1119 = vadd.f32 %v1022, %v1118
        %v1120 = vpop.f32.mrf.mxu0
        %1121 = vmatprep.mubr.bf16.mxu0 0
        %1122 = vmatmul.mubr.bf16.gmra.mxu0 %v847
        %v1123 = vpop.f32.mrf.mxu0
        %v1124 = vadd.f32 %v1027, %v1123
        %v1125 = vpop.f32.mrf.mxu0
        %v1126 = vpop.f32.mrf.mxu0
        %v1127 = vadd.f32 %v1030, %v1126
        %v1128 = vpop.f32.mrf.mxu0
        %1129 = vmatprep.mubr.bf16.mxu0 0
        %1130 = vmatmul.mubr.bf16.gmra.mxu0 %v850
        %v1131 = vpop.f32.mrf.mxu0
        %v1132 = vadd.f32 %v1035, %v1131
        %v1133 = vpop.f32.mrf.mxu0
        %v1134 = vpop.f32.mrf.mxu0
        %v1135 = vadd.f32 %v1038, %v1134
        %v1136 = vpop.f32.mrf.mxu0
        %1137 = vmatprep.mubr.bf16.mxu0 0
        %1138 = vmatmul.mubr.bf16.gmra.mxu0 %v853
        %v1139 = vpop.f32.mrf.mxu0
        %v1140 = vadd.f32 %v1043, %v1139
        %v1141 = vpop.f32.mrf.mxu0
        %v1142 = vpop.f32.mrf.mxu0
        %v1143 = vadd.f32 %v1046, %v1142
        %v1144 = vpop.f32.mrf.mxu0
        %1145 = vdwg.mxu0
        %s1146 = sld [smem:[#allocation2]]
        %vm1147 = vcmp.ge.f32.partialorder %v1084, 0.0
        %vm1148 = vcmp.ge.f32.partialorder %v1087, 0.0
        %vm1149 = vcmp.ge.f32.partialorder %v1092, 0.0
        %vm1150 = vcmp.ge.f32.partialorder %v1095, 0.0
        %vm1151 = vcmp.ge.f32.partialorder %v1100, 0.0
        %vm1152 = vcmp.ge.f32.partialorder %v1103, 0.0
        %vm1153 = vcmp.ge.f32.partialorder %v1108, 0.0
        %vm1154 = vcmp.ge.f32.partialorder %v1111, 0.0
        %vm1155 = vcmp.ge.f32.partialorder %v1116, 0.0
        %vm1156 = vcmp.ge.f32.partialorder %v1119, 0.0
        %vm1157 = vcmp.ge.f32.partialorder %v1124, 0.0
        %vm1158 = vcmp.ge.f32.partialorder %v1127, 0.0
        %vm1159 = vcmp.ge.f32.partialorder %v1132, 0.0
        %vm1160 = vcmp.ge.f32.partialorder %v1135, 0.0
        %vm1161 = vcmp.ge.f32.partialorder %v1140, 0.0
        %vm1162 = vcmp.ge.f32.partialorder %v1143, 0.0
        %v1163 = vstv %s1146
        %v1164 = vmul.f32 %v1163, %v1084
        %v1165 = vmul.f32 %v1163, %v1087
        %v1166 = vmul.f32 %v1163, %v1092
        %v1167 = vmul.f32 %v1163, %v1095
        %v1168 = vmul.f32 %v1163, %v1100
        %v1169 = vmul.f32 %v1163, %v1103
        %v1170 = vmul.f32 %v1163, %v1108
        %v1171 = vmul.f32 %v1163, %v1111
        %v1172 = vmul.f32 %v1163, %v1116
        %v1173 = vmul.f32 %v1163, %v1119
        %v1174 = vmul.f32 %v1163, %v1124
        %v1175 = vmul.f32 %v1163, %v1127
        %v1176 = vmul.f32 %v1163, %v1132
        %v1177 = vmul.f32 %v1163, %v1135
        %v1178 = vmul.f32 %v1163, %v1140
        %v1179 = vmul.f32 %v1163, %v1143
        %v1180 = vsel %vm1147, %v1084, %v1164
        %v1181 = vsel %vm1148, %v1087, %v1165
        %v1182 = vsel %vm1149, %v1092, %v1166
        %v1183 = vsel %vm1150, %v1095, %v1167
        %v1184 = vsel %vm1151, %v1100, %v1168
        %v1185 = vsel %vm1152, %v1103, %v1169
        %v1186 = vsel %vm1153, %v1108, %v1170
        %v1187 = vsel %vm1154, %v1111, %v1171
        %v1188 = vsel %vm1155, %v1116, %v1172
        %v1189 = vsel %vm1156, %v1119, %v1173
        %v1190 = vsel %vm1157, %v1124, %v1174
        %v1191 = vsel %vm1158, %v1127, %v1175
        %v1192 = vsel %vm1159, %v1132, %v1176
        %v1193 = vsel %vm1160, %v1135, %v1177
        %v1194 = vsel %vm1161, %v1140, %v1178
        %v1195 = vsel %vm1162, %v1143, %v1179
        %1196 = vst [vmem:[%s277] sm:$0xff] %v1180
        %1197 = vst [vmem:[%s277 + $0x8] sm:$0xff] %v1181
        %1198 = vst [vmem:[%s277 + $0x10] sm:$0xff] %v1182
        %1199 = vst [vmem:[%s277 + $0x18] sm:$0xff] %v1183
        %1200 = vst [vmem:[%s277 + $0x20] sm:$0xff] %v1184
        %1201 = vst [vmem:[%s277 + $0x28] sm:$0xff] %v1185
        %1202 = vst [vmem:[%s277 + $0x30] sm:$0xff] %v1186
        %1203 = vst [vmem:[%s277 + $0x38] sm:$0xff] %v1187
        %1204 = vst [vmem:[%s277 + $0x40] sm:$0xff] %v1188
        %1205 = vst [vmem:[%s277 + $0x48] sm:$0xff] %v1189
        %1206 = vst [vmem:[%s277 + $0x50] sm:$0xff] %v1190
        %1207 = vst [vmem:[%s277 + $0x58] sm:$0xff] %v1191
        %1208 = vst [vmem:[%s277 + $0x60] sm:$0xff] %v1192
        %1209 = vst [vmem:[%s277 + $0x68] sm:$0xff] %v1193
        %1210 = vst [vmem:[%s277 + $0x70] sm:$0xff] %v1194
        %1211 = vst [vmem:[%s277 + $0x78] sm:$0xff] %v1195
        %s1212 = sand.u32 %s143, 1
        %s1213 = sand.u32 %s143, 1
        %s1214 = smul.addr %s1213, 128
        %s1215 = scalar_lea.vmem [#allocation7], %s1214
        // Predicated region
        $region45: #{upsample_block.1} parent=35 // pred_check
          %p1216 = pneg %p153
        $region46: #{upsample_block.1} parent=35 // pred_check_branch
          %1218 = sbr.rel (%p1216) target = $region48
        $region47: #{upsample_block.1} parent=35 // pred_region
          %s1219 = smul.u32 16, %s26
          %s1220 = smul.addr %s1219, 2
          %s1221 = sadd.s32 %s27, %s1220
          %s1222 = smul.addr %s1221, 8
          %s1223 = scalar_lea.vmem %s4, %s1222
          // Predicated region
          $region49: #{upsample_block.1} parent=47 // pred_check
            _
          $region50: #{upsample_block.1} parent=47 // pred_check_branch
            %1225 = sbr.rel (0) target = $region52
          $region51: #{upsample_block.1} parent=47 // pred_region
            // Predicated region
            $region53: #{upsample_block.1} parent=51 // pred_check
              _
            $region54: #{upsample_block.1} parent=51 // pred_check_branch
              %1227 = sbr.rel (0) target = $region56
            $region55: #{upsample_block.1} parent=51 // pred_region
              // Predicated region
              $region68: #{upsample_block.1} parent=55 // pred_check
                _
              $region69: #{upsample_block.1} parent=55 // pred_check_branch
                %1273 = sbr.rel (0) target = $region71
              $region70: #{upsample_block.1} parent=55 // pred_region
                loop: start=0, step=1, limit=1
                $region72: #{upsample_block.1} parent=70 // loop_pre_header
                  _
                $region73: #{upsample_block.1} parent=70 // loop_header
                  %s1275 = sphi 0, %s1279
                  %p1276 = scmp.ge.s32.totalorder %s1275, 1
                  %s1280 = sphi %s1215, %s1215
                  %s1281 = sphi %s1223, %s1223
                $region74: #{upsample_block.1} parent=70 // loop_header_branch
                  %1278 = sbr.rel (%p1276) target = $region78
                $region75: #{upsample_block.1} parent=70 // loop_body
                  %v1282 = vld [vmem:[%s1280] sm:$0xff]
                  %1283 = vst [vmem:[%s1281] sm:$0xff] %v1282
                  %v1284 = vld [vmem:[%s1280 + $0x8] sm:$0xff]
                  %1285 = vst [vmem:[%s1281 + $0x10] sm:$0xff] %v1284
                  %v1286 = vld [vmem:[%s1280 + $0x10] sm:$0xff]
                  %1287 = vst [vmem:[%s1281 + $0x20] sm:$0xff] %v1286
                  %v1288 = vld [vmem:[%s1280 + $0x18] sm:$0xff]
                  %1289 = vst [vmem:[%s1281 + $0x30] sm:$0xff] %v1288
                  %v1290 = vld [vmem:[%s1280 + $0x20] sm:$0xff]
                  %1291 = vst [vmem:[%s1281 + $0x40] sm:$0xff] %v1290
                  %v1292 = vld [vmem:[%s1280 + $0x28] sm:$0xff]
                  %1293 = vst [vmem:[%s1281 + $0x50] sm:$0xff] %v1292
                  %v1294 = vld [vmem:[%s1280 + $0x30] sm:$0xff]
                  %1295 = vst [vmem:[%s1281 + $0x60] sm:$0xff] %v1294
                  %v1296 = vld [vmem:[%s1280 + $0x38] sm:$0xff]
                  %1297 = vst [vmem:[%s1281 + $0x70] sm:$0xff] %v1296
                  %v1298 = vld [vmem:[%s1280 + $0x40] sm:$0xff]
                  %1299 = vst [vmem:[%s1281 + $0x80] sm:$0xff] %v1298
                  %v1300 = vld [vmem:[%s1280 + $0x48] sm:$0xff]
                  %1301 = vst [vmem:[%s1281 + $0x90] sm:$0xff] %v1300
                  %v1302 = vld [vmem:[%s1280 + $0x50] sm:$0xff]
                  %1303 = vst [vmem:[%s1281 + $0xa0] sm:$0xff] %v1302
                  %v1304 = vld [vmem:[%s1280 + $0x58] sm:$0xff]
                  %1305 = vst [vmem:[%s1281 + $0xb0] sm:$0xff] %v1304
                  %v1306 = vld [vmem:[%s1280 + $0x60] sm:$0xff]
                  %1307 = vst [vmem:[%s1281 + $0xc0] sm:$0xff] %v1306
                  %v1308 = vld [vmem:[%s1280 + $0x68] sm:$0xff]
                  %1309 = vst [vmem:[%s1281 + $0xd0] sm:$0xff] %v1308
                  %v1310 = vld [vmem:[%s1280 + $0x70] sm:$0xff]
                  %1311 = vst [vmem:[%s1281 + $0xe0] sm:$0xff] %v1310
                  %v1312 = vld [vmem:[%s1280 + $0x78] sm:$0xff]
                  %1313 = vst [vmem:[%s1281 + $0xf0] sm:$0xff] %v1312
                $region76: #{upsample_block.1} parent=70 // loop_footer
                  %s1279 = sadd.s32 1, %s1275
                $region77: #{upsample_block.1} parent=70 // loop_footer_branch
                  %1274 = sbr.rel target = $region73
                $region78: #{upsample_block.1} parent=70 // loop_exit
                  _
              $region71: #{upsample_block.1} parent=55 // pred_fallthru
                _
              // Predicated region
              $region79: #{upsample_block.1} parent=55 // pred_check
                _
              $region80: #{upsample_block.1} parent=55 // pred_check_branch
                %1315 = sbr.rel target = $region82
              $region81: #{upsample_block.1} parent=55 // pred_region
                _
              $region82: #{upsample_block.1} parent=55 // pred_fallthru
                _
            $region56: #{upsample_block.1} parent=51 // pred_fallthru
              _
            // Predicated region
            $region57: #{upsample_block.1} parent=51 // pred_check
              _
            $region58: #{upsample_block.1} parent=51 // pred_check_branch
              %1229 = sbr.rel target = $region60
            $region59: #{upsample_block.1} parent=51 // pred_region
              %s1231 = ssub.s32 256, 1
              loop: start=0, step=1, limit=1
              $region61: #{upsample_block.1} parent=59 // loop_pre_header
                _
              $region62: #{upsample_block.1} parent=59 // loop_header
                %s1233 = sphi 0, %s1237
                %p1234 = scmp.ge.s32.totalorder %s1233, 1
                %s1238 = sphi %s1215, %s1215
                %s1239 = sphi %s1223, %s1223
              $region63: #{upsample_block.1} parent=59 // loop_header_branch
                %1236 = sbr.rel (%p1234) target = $region67
              $region64: #{upsample_block.1} parent=59 // loop_body
                %v1240 = vld [vmem:[%s1238] sm:%s1231]
                %1241 = vst [vmem:[%s1239] sm:%s1231] %v1240
                %v1242 = vld [vmem:[%s1238 + $0x8] sm:%s1231]
                %1243 = vst [vmem:[%s1239 + $0x10] sm:%s1231] %v1242
                %v1244 = vld [vmem:[%s1238 + $0x10] sm:%s1231]
                %1245 = vst [vmem:[%s1239 + $0x20] sm:%s1231] %v1244
                %v1246 = vld [vmem:[%s1238 + $0x18] sm:%s1231]
                %1247 = vst [vmem:[%s1239 + $0x30] sm:%s1231] %v1246
                %v1248 = vld [vmem:[%s1238 + $0x20] sm:%s1231]
                %1249 = vst [vmem:[%s1239 + $0x40] sm:%s1231] %v1248
                %v1250 = vld [vmem:[%s1238 + $0x28] sm:%s1231]
                %1251 = vst [vmem:[%s1239 + $0x50] sm:%s1231] %v1250
                %v1252 = vld [vmem:[%s1238 + $0x30] sm:%s1231]
                %1253 = vst [vmem:[%s1239 + $0x60] sm:%s1231] %v1252
                %v1254 = vld [vmem:[%s1238 + $0x38] sm:%s1231]
                %1255 = vst [vmem:[%s1239 + $0x70] sm:%s1231] %v1254
                %v1256 = vld [vmem:[%s1238 + $0x40] sm:%s1231]
                %1257 = vst [vmem:[%s1239 + $0x80] sm:%s1231] %v1256
                %v1258 = vld [vmem:[%s1238 + $0x48] sm:%s1231]
                %1259 = vst [vmem:[%s1239 + $0x90] sm:%s1231] %v1258
                %v1260 = vld [vmem:[%s1238 + $0x50] sm:%s1231]
                %1261 = vst [vmem:[%s1239 + $0xa0] sm:%s1231] %v1260
                %v1262 = vld [vmem:[%s1238 + $0x58] sm:%s1231]
                %1263 = vst [vmem:[%s1239 + $0xb0] sm:%s1231] %v1262
                %v1264 = vld [vmem:[%s1238 + $0x60] sm:%s1231]
                %1265 = vst [vmem:[%s1239 + $0xc0] sm:%s1231] %v1264
                %v1266 = vld [vmem:[%s1238 + $0x68] sm:%s1231]
                %1267 = vst [vmem:[%s1239 + $0xd0] sm:%s1231] %v1266
                %v1268 = vld [vmem:[%s1238 + $0x70] sm:%s1231]
                %1269 = vst [vmem:[%s1239 + $0xe0] sm:%s1231] %v1268
                %v1270 = vld [vmem:[%s1238 + $0x78] sm:%s1231]
                %1271 = vst [vmem:[%s1239 + $0xf0] sm:%s1231] %v1270
              $region65: #{upsample_block.1} parent=59 // loop_footer
                %s1237 = sadd.s32 1, %s1233
              $region66: #{upsample_block.1} parent=59 // loop_footer_branch
                %1232 = sbr.rel target = $region62
              $region67: #{upsample_block.1} parent=59 // loop_exit
                _
            $region60: #{upsample_block.1} parent=51 // pred_fallthru
              _
          $region52: #{upsample_block.1} parent=47 // pred_fallthru
            _
          %1316 = vnop
        $region48: #{upsample_block.1} parent=35 // pred_fallthru
          _
      $region36: #{upsample_block.1} parent=5 // pred_fallthru
        _
      %p1317 = scmp.le.s32.totalorder 2, %s17
      // Predicated region
      $region83: #{upsample_block.1} parent=5 // pred_check
        %p1318 = pneg %p1317
      $region84: #{upsample_block.1} parent=5 // pred_check_branch
        %1320 = sbr.rel (%p1318) target = $region86
      $region85: #{upsample_block.1} parent=5 // pred_region
        %s1321 = ssub.s32 %s17, 2
        // Predicated region
        $region87: #{upsample_block.1} parent=85 // pred_check
          %p1322 = pneg %p159
        $region88: #{upsample_block.1} parent=85 // pred_check_branch
          %1324 = sbr.rel (%p1322) target = $region90
        $region89: #{upsample_block.1} parent=85 // pred_region
          %s1325 = sand.u32 %s144, 1
          %s1326 = sand.u32 %s144, 1
          %s1327 = smul.addr %s1326, 128
          %s1328 = scalar_lea.vmem [#allocation7], %s1327
        $region90: #{upsample_block.1} parent=85 // pred_fallthru
          _
      $region86: #{upsample_block.1} parent=5 // pred_fallthru
        _
    $region6: #{upsample_block.1} parent=1 // loop_footer
      %s21 = sadd.s32 1, %s17
    $region7: #{upsample_block.1} parent=1 // loop_footer_branch
      %16 = sbr.rel target = $region3
    $region8: #{upsample_block.1} parent=1 // loop_exit
      _
    %1329 = vsyncpa [#allocation4], 1
    %s1330 = scalar_lea.sflag [#allocation4], 1
    %1331 = vsyncpa %s1330, 1
    %1332 = vsyncpa [#allocation6], 1
    %s1333 = scalar_lea.sflag [#allocation6], 1
    %1334 = vsyncpa %s1333, 1

</llo_original>
